<compile_context>
chip_gen: v5e
topology: v5e:2x2
jax: 0.10.0
libtpu: 0.0.40
codegen_flags: <defaults>
</compile_context>

<pallas_src>
import functools

import numpy as np
import jax
import jax.numpy as jnp
from jax.experimental import pallas as pl
from jax.experimental.pallas import tpu as pltpu


def _conv_bn_lrelu_kernel(x_ref, b_ref, shift_ref, o_ref, *,
                          TH, KH, stride, dilation, neg_slope):
    """One grid step computes a TH-row output tile of one image.

    x_ref:     (1, 1, TH_IN, W_pad*C_in)      halo'd input row tile (lane-dense rows)
    b_ref:     (KH, W_pad*C_in, W_out*C_out)  banded conv weights, BN scale folded in
    shift_ref: (1, W_out*C_out)               folded BN shift (+ conv bias), f32
    o_ref:     (1, TH, W_out*C_out)           lane-dense output tile
    """
    wc_out = o_ref.shape[-1]
    acc = jnp.zeros((TH, wc_out), dtype=jnp.float32)

    # KH matmuls with a wide contraction (K = W_pad*C_in) instead of KH*KW tiny K=C_in ones.
    for kh in range(KH):                                   # static unrolled loop
        lo = kh * dilation
        if stride == 1:
            rows = x_ref[0, 0, lo:lo + TH, :]              # (TH, W_pad*C_in), contiguous
        else:
            # length-bounded strided window inside the halo tile (never past TH_IN).
            rows = x_ref[0, 0, lo:lo + (TH - 1) * stride + 1:stride, :]
        acc = acc + jnp.dot(rows, b_ref[kh], preferred_element_type=jnp.float32)

    # Fused BatchNorm shift (scale already folded into b) + LeakyReLU(0.1), f32 epilogue.
    y = acc + shift_ref[...]                               # (1, WCo) broadcasts over TH rows
    y = jnp.where(y > 0, y, neg_slope * y)
    o_ref[0] = y.astype(o_ref.dtype)


def _pick_row_tile(H_out, stride, KH, dilation, WC_in, WC_out, in_itemsize,
                   budget_bytes=8 * 1024 * 1024, max_rows=512):
    """Largest multiple-of-8 divisor of H_out whose per-step buffers fit the budget."""
    best = None
    th = 8
    while th <= min(H_out, max_rows):
        if H_out % th == 0:
            th_in = (th - 1) * stride + (KH - 1) * dilation + 1
            need = (2 * th_in * WC_in * in_itemsize        # double-buffered input tile
                    + 2 * th * WC_out * 4                  # double-buffered f32 output tile
                    + th * WC_out * 4)                     # f32 accumulator
            if need <= budget_bytes:
                best = th
        th += 8
    return best if best is not None else H_out


def conv_bn_leakyrelu(x_nchw, weight, bias, gamma, beta, running_mean, running_var,
                      *, padding=0, stride=1, dilation=1, eps=1e-5, neg_slope=0.1,
                      compute_dtype=jnp.float32):
    """Forward pass matching nn.Conv2d -> nn.BatchNorm2d(eval) -> nn.LeakyReLU(0.1).

    x_nchw:  (N, C_in, H, W)         float32   (PyTorch layout; transposed internally)
    weight:  (C_out, C_in, KH, KW)   float32   (PyTorch conv weight layout)
    bias:    (C_out,)
    compute_dtype: dtype fed to the MXU (float32 or bfloat16); accumulation is f32.
    """
    N, C_in, H, W = x_nchw.shape
    C_out, _, KH, KW = weight.shape

    H_out = (H + 2 * padding - dilation * (KH - 1) - 1) // stride + 1
    W_out = (W + 2 * padding - dilation * (KW - 1) - 1) // stride + 1
    H_pad, W_pad = H + 2 * padding, W + 2 * padding
    WC_in, WC_out = W_pad * C_in, W_out * C_out
    in_itemsize = jnp.dtype(compute_dtype).itemsize

    # ---- glue: layout, padding, halo tiling (plain JAX / XLA) ----
    # TODO(synk): if the surrounding model consumes NHWC, the NCHW<->NHWC transposes and
    #             the final un-flatten can be dropped entirely.
    x_nhwc = jnp.transpose(x_nchw, (0, 2, 3, 1))
    x_pad = jnp.pad(x_nhwc, ((0, 0), (padding, padding), (padding, padding), (0, 0)))
    x_flat = x_pad.reshape(N, H_pad, WC_in).astype(compute_dtype)   # lane-dense rows

    # Spatial tiling: TH output rows per grid step; halo'd input tile has TH_IN rows.
    TH = _pick_row_tile(H_out, stride, KH, dilation, WC_in, WC_out, in_itemsize)
    HT = H_out // TH
    TH_IN = (TH - 1) * stride + (KH - 1) * dilation + 1
    x_tiles = jnp.stack(
        [jax.lax.slice_in_dim(x_flat, t * TH * stride, t * TH * stride + TH_IN, axis=1)
         for t in range(HT)], axis=1)                                # (N, HT, TH_IN, WC_in)

    # ---- fold BN (eval) + conv bias into the weights / one shift vector ----
    scale = gamma / jnp.sqrt(running_var + eps)                      # (C_out,)
    shift = beta + (bias - running_mean) * scale                     # (C_out,)

    # (C_out, C_in, KH, KW) -> (KH, KW, C_in, C_out), with BN scale folded in.
    w_scaled = (jnp.transpose(weight, (2, 3, 1, 0)).astype(jnp.float32)
                * scale[None, None, None, :])

    # Banded weight: B[kh, wp*C_in + ci, w*C_out + co] = w_scaled[kh, kw, ci, co]
    #                 iff wp == w*stride + kw*dilation, else 0.   (static placement pattern)
    P = np.zeros((KW, W_out, W_pad), np.float32)
    for kw in range(KW):
        for w in range(W_out):
            P[kw, w, w * stride + kw * dilation] = 1.0
    b_banded = jnp.einsum('kwq,hkio->hqiwo', jnp.asarray(P), w_scaled)
    b_banded = b_banded.reshape(KH, WC_in, WC_out).astype(compute_dtype)

    shift_tiled = jnp.tile(shift, W_out).reshape(1, WC_out).astype(jnp.float32)

    kernel = functools.partial(
        _conv_bn_lrelu_kernel, TH=TH, KH=KH,
        stride=stride, dilation=dilation, neg_slope=neg_slope)

    cost = pl.CostEstimate(
        flops=2 * N * H_out * W_out * C_out * C_in * KH * KW,
        transcendentals=0,
        bytes_accessed=(x_tiles.size * in_itemsize
                        + b_banded.size * in_itemsize
                        + N * H_out * WC_out * 4),
    )

    out_flat = pl.pallas_call(
        kernel,
        out_shape=jax.ShapeDtypeStruct((N, H_out, WC_out), jnp.float32),
        grid_spec=pltpu.PrefetchScalarGridSpec(
            num_scalar_prefetch=0,
            grid=(N, HT),
            in_specs=[
                pl.BlockSpec((1, 1, TH_IN, WC_in), lambda n, t: (n, t, 0, 0)),
                pl.BlockSpec((KH, WC_in, WC_out), lambda n, t: (0, 0, 0)),
                pl.BlockSpec((1, WC_out), lambda n, t: (0, 0)),
            ],
            out_specs=pl.BlockSpec((1, TH, WC_out), lambda n, t: (n, t, 0)),
        ),
        compiler_params=pltpu.CompilerParams(
            dimension_semantics=("parallel", "parallel"),
            vmem_limit_bytes=32 * 1024 * 1024,
        ),
        cost_estimate=cost,
    )(x_tiles, b_banded, shift_tiled)

    out_nhwc = out_flat.reshape(N, H_out, W_out, C_out)
    return jnp.transpose(out_nhwc, (0, 3, 1, 2))                     # back to NCHW


def _reference(x_nchw, weight, bias, gamma, beta, running_mean, running_var,
               *, padding, stride, dilation, eps=1e-5, neg_slope=0.1):
    y = jax.lax.conv_general_dilated(
        x_nchw, weight,
        window_strides=(stride, stride),
        padding=[(padding, padding), (padding, padding)],
        rhs_dilation=(dilation, dilation),
        dimension_numbers=("NCHW", "OIHW", "NCHW"),
    ) + bias[None, :, None, None]
    scale = gamma / jnp.sqrt(running_var + eps)
    shift = beta - running_mean * scale
    y = y * scale[None, :, None, None] + shift[None, :, None, None]
    return jnp.where(y > 0, y, neg_slope * y)


if __name__ == "__main__":
    key = jax.random.PRNGKey(0)
    kx, kw, kb, kg, kbe, km, kv = jax.random.split(key, 7)

    # Module config: Conv_BN_LeakyReLU(in_dim=4, out_dim=8, ksize=3, padding=1, stride=1)
    N, C_in, H, W = 2, 4, 16, 16
    C_out, KH, KW = 8, 3, 3
    padding, stride, dilation = 1, 1, 1

    x = jax.random.normal(kx, (N, C_in, H, W), dtype=jnp.float32)
    weight = jax.random.normal(kw, (C_out, C_in, KH, KW), dtype=jnp.float32) * 0.1
    bias = jax.random.normal(kb, (C_out,), dtype=jnp.float32) * 0.1
    gamma = jax.random.normal(kg, (C_out,), dtype=jnp.float32) * 0.1 + 1.0
    beta = jax.random.normal(kbe, (C_out,), dtype=jnp.float32) * 0.1
    running_mean = jax.random.normal(km, (C_out,), dtype=jnp.float32) * 0.1
    running_var = jax.random.uniform(kv, (C_out,), dtype=jnp.float32, minval=0.5, maxval=1.5)

    ref = _reference(x, weight, bias, gamma, beta, running_mean, running_var,
                     padding=padding, stride=stride, dilation=dilation)

    # f32 path (bit-for-bit semantics of the PyTorch module, tight tolerance).
    out = conv_bn_leakyrelu(x, weight, bias, gamma, beta, running_mean, running_var,
                            padding=padding, stride=stride, dilation=dilation,
                            compute_dtype=jnp.float32)
    out = jax.block_until_ready(out)
    assert out.shape == (N, C_out, H, W)
    assert jnp.allclose(out, ref, atol=1e-4, rtol=1e-4), "f32 kernel mismatch vs reference"

    # bf16 MXU path (halved DMA bytes; f32 accumulation + epilogue), looser tolerance.
    out_bf16 = conv_bn_leakyrelu(x, weight, bias, gamma, beta, running_mean, running_var,
                                 padding=padding, stride=stride, dilation=dilation,
                                 compute_dtype=jnp.bfloat16)
    out_bf16 = jax.block_until_ready(out_bf16)
    assert jnp.allclose(out_bf16, ref, atol=5e-2, rtol=5e-2), "bf16 kernel mismatch vs reference"

    print("KERNEL_OK")
</pallas_src>

<mosaic_0001>
module attributes {stable_mosaic.version = 11 : i64} {
  func.func @_conv_bn_lrelu_kernel(%arg0: i32, %arg1: i32, %arg2: memref<1x1x18x72xf32, #tpu.memory_space<vmem>>, %arg3: memref<3x72x128xf32, #tpu.memory_space<vmem>>, %arg4: memref<1x128xf32, #tpu.memory_space<vmem>>, %arg5: memref<1x16x128xf32, #tpu.memory_space<vmem>>) attributes {dimension_semantics = [#tpu.dimension_semantics<parallel>, #tpu.dimension_semantics<parallel>], iteration_bounds = array<i64: 2, 1>, scalar_prefetch = 0 : i64, scratch_operands = 0 : i64, tpu.core_type = #tpu.core_type<tc>, window_params = [{transform_indices = @transform_0, window_bounds = array<i64: 1, 1, 18, 72>}, {pipeline_mode = #tpu.pipeline_mode<synchronous>, transform_indices = @transform_1, window_bounds = array<i64: 3, 72, 128>}, {pipeline_mode = #tpu.pipeline_mode<synchronous>, transform_indices = @transform_2, window_bounds = array<i64: 1, 128>}, {transform_indices = @transform_3, window_bounds = array<i64: 1, 16, 128>}]} {
    %cst = arith.constant 0.000000e+00 : f32
    %0 = vector.broadcast %cst : f32 to vector<16x128xf32>
    %c0 = arith.constant 0 : index
    %c0_0 = arith.constant 0 : index
    %c0_1 = arith.constant 0 : index
    %c0_2 = arith.constant 0 : index
    %1 = vector.load %arg2[%c0, %c0_0, %c0_1, %c0_2] : memref<1x1x18x72xf32, #tpu.memory_space<vmem>>, vector<1x1x16x72xf32>
    %2 = vector.shape_cast %1 : vector<1x1x16x72xf32> to vector<16x72xf32>
    %c0_3 = arith.constant 0 : index
    %c0_4 = arith.constant 0 : index
    %c0_5 = arith.constant 0 : index
    %3 = vector.load %arg3[%c0_3, %c0_4, %c0_5] : memref<3x72x128xf32, #tpu.memory_space<vmem>>, vector<1x72x128xf32>
    %4 = vector.shape_cast %3 : vector<1x72x128xf32> to vector<72x128xf32>
    %cst_6 = arith.constant dense<0.000000e+00> : vector<16x128xf32>
    %5 = tpu.matmul %2, %4, %cst_6 {dimension_numbers = #tpu.dot_dimension_numbers<[1], [0], [0], [1], [0, 0, 1, 1], [], []>} : vector<16x72xf32>, vector<72x128xf32>, vector<16x128xf32> -> vector<16x128xf32>
    %6 = arith.addf %0, %5 : vector<16x128xf32>
    %c0_7 = arith.constant 0 : index
    %c0_8 = arith.constant 0 : index
    %c1 = arith.constant 1 : index
    %c0_9 = arith.constant 0 : index
    %7 = vector.load %arg2[%c0_7, %c0_8, %c1, %c0_9] : memref<1x1x18x72xf32, #tpu.memory_space<vmem>>, vector<1x1x16x72xf32>
    %8 = vector.shape_cast %7 : vector<1x1x16x72xf32> to vector<16x72xf32>
    %c1_10 = arith.constant 1 : index
    %c0_11 = arith.constant 0 : index
    %c0_12 = arith.constant 0 : index
    %9 = vector.load %arg3[%c1_10, %c0_11, %c0_12] : memref<3x72x128xf32, #tpu.memory_space<vmem>>, vector<1x72x128xf32>
    %10 = vector.shape_cast %9 : vector<1x72x128xf32> to vector<72x128xf32>
    %cst_13 = arith.constant dense<0.000000e+00> : vector<16x128xf32>
    %11 = tpu.matmul %8, %10, %cst_13 {dimension_numbers = #tpu.dot_dimension_numbers<[1], [0], [0], [1], [0, 0, 1, 1], [], []>} : vector<16x72xf32>, vector<72x128xf32>, vector<16x128xf32> -> vector<16x128xf32>
    %12 = arith.addf %6, %11 : vector<16x128xf32>
    %c0_14 = arith.constant 0 : index
    %c0_15 = arith.constant 0 : index
    %c2 = arith.constant 2 : index
    %c0_16 = arith.constant 0 : index
    %13 = vector.load %arg2[%c0_14, %c0_15, %c2, %c0_16] : memref<1x1x18x72xf32, #tpu.memory_space<vmem>>, vector<1x1x16x72xf32>
    %14 = vector.shape_cast %13 : vector<1x1x16x72xf32> to vector<16x72xf32>
    %c2_17 = arith.constant 2 : index
    %c0_18 = arith.constant 0 : index
    %c0_19 = arith.constant 0 : index
    %15 = vector.load %arg3[%c2_17, %c0_18, %c0_19] : memref<3x72x128xf32, #tpu.memory_space<vmem>>, vector<1x72x128xf32>
    %16 = vector.shape_cast %15 : vector<1x72x128xf32> to vector<72x128xf32>
    %cst_20 = arith.constant dense<0.000000e+00> : vector<16x128xf32>
    %17 = tpu.matmul %14, %16, %cst_20 {dimension_numbers = #tpu.dot_dimension_numbers<[1], [0], [0], [1], [0, 0, 1, 1], [], []>} : vector<16x72xf32>, vector<72x128xf32>, vector<16x128xf32> -> vector<16x128xf32>
    %18 = arith.addf %12, %17 : vector<16x128xf32>
    %c0_21 = arith.constant 0 : index
    %c0_22 = arith.constant 0 : index
    %19 = vector.load %arg4[%c0_21, %c0_22] : memref<1x128xf32, #tpu.memory_space<vmem>>, vector<1x128xf32>
    %20 = vector.broadcast %19 : vector<1x128xf32> to vector<16x128xf32>
    %21 = arith.addf %18, %20 : vector<16x128xf32>
    %cst_23 = arith.constant 0.000000e+00 : f32
    %22 = vector.broadcast %cst_23 : f32 to vector<16x128xf32>
    %23 = arith.cmpf ogt, %21, %22 : vector<16x128xf32>
    %cst_24 = arith.constant 1.000000e-01 : f32
    %24 = vector.broadcast %cst_24 : f32 to vector<16x128xf32>
    %25 = arith.mulf %24, %21 : vector<16x128xf32>
    %26 = arith.select %23, %21, %25 : vector<16x128xi1>, vector<16x128xf32>
    %c0_25 = arith.constant 0 : index
    %c0_26 = arith.constant 0 : index
    %c0_27 = arith.constant 0 : index
    %27 = vector.load %arg5[%c0_25, %c0_26, %c0_27] : memref<1x16x128xf32, #tpu.memory_space<vmem>>, vector<1x16x128xf32>
    %28 = vector.shape_cast %27 : vector<1x16x128xf32> to vector<16x128xf32>
    %29 = vector.shape_cast %26 : vector<16x128xf32> to vector<1x16x128xf32>
    tpu.vector_store %arg5[%c0_25, %c0_26, %c0_27], %29 {strides = array<i32>} : memref<1x16x128xf32, #tpu.memory_space<vmem>>, vector<1x16x128xf32>,
    return
  }
  func.func @transform_0(%arg0: i32, %arg1: i32) -> (i32, i32, i32, i32) {
    %c0_i32 = arith.constant 0 : i32
    %c0_i32_0 = arith.constant 0 : i32
    %c0_i32_1 = arith.constant 0 : i32
    return %arg0, %arg1, %c0_i32, %c0_i32_0 : i32, i32, i32, i32
  }
  func.func @transform_1(%arg0: i32, %arg1: i32) -> (i32, i32, i32) {
    %c0_i32 = arith.constant 0 : i32
    %c0_i32_0 = arith.constant 0 : i32
    %c0_i32_1 = arith.constant 0 : i32
    %c0_i32_2 = arith.constant 0 : i32
    return %c0_i32, %c0_i32_0, %c0_i32_1 : i32, i32, i32
  }
  func.func @transform_2(%arg0: i32, %arg1: i32) -> (i32, i32) {
    %c0_i32 = arith.constant 0 : i32
    %c0_i32_0 = arith.constant 0 : i32
    %c0_i32_1 = arith.constant 0 : i32
    return %c0_i32, %c0_i32_0 : i32, i32
  }
  func.func @transform_3(%arg0: i32, %arg1: i32) -> (i32, i32, i32) {
    %c0_i32 = arith.constant 0 : i32
    %c0_i32_0 = arith.constant 0 : i32
    return %arg0, %arg1, %c0_i32 : i32, i32, i32
  }
}

</mosaic_0001>

<llo_original>
// kernel: tpu_custom_call.1
$region0: #{tpu_custom_call.1}
  #allocation0 [shape = 'u32[]', space=smem, size = 0x4, offset = 0x4, fixed_abs, tag = 'smem constant byte address 0x4 - core index']
  #allocation1 [shape = 'u32[72,128]{1,0:T(1,128)}', space=vmem, size = 0x9000, scoped, tag = 'internal scratch']
  %s0 = inlined_call_operand.vmem [shape: f32[2,1,18,72], index: 0, kind: input, shape index: {}]
  %s1 = inlined_call_operand.hbm [shape: f32[3,72,128], index: 1, kind: input, shape index: {}]
  %s2 = inlined_call_operand.vmem [shape: f32[1,128], index: 2, kind: input, shape index: {}]
  %s3 = inlined_call_operand.hbm [shape: f32[2,16,128], index: 3, kind: output, shape index: {}]
  %s4 = sld [smem:[#allocation0]]
  $region49: #{tpu_custom_call.1} parent=0
    _
  %s6 = ssub.s32 1, %s4
  %s7 = scalar_select 0, %s6, %s4
  $region1: #{tpu_custom_call.1} parent=0
    #allocation2 [shape = 'u8[110592]{0}', space=vmem, size = 0x1b000, scoped, tag = 'input window, operand 1, single buffered']
    #allocation3 [shape = 's32[2]{0}', space=sflag, size = 0x8, scoped, tag = 'scoped memory for tpu_custom_call.1']
    #allocation4 [shape = 's32[2]{0}', space=sflag, size = 0x8, scoped, tag = 'scoped memory for tpu_custom_call.1']
    #allocation5 [shape = 'u8[16384]{0}', space=vmem, size = 0x4000, scoped, tag = 'output window, operand 0']
    %8 = vsyncpa [#allocation3], 0
    %9 = vsyncpa [#allocation4], 0
    %s10 = scalar_lea.sflag [#allocation4], 1
    %11 = vsyncpa %s10, 0
    loop: start=0, step=1, limit=4
    $region2: #{tpu_custom_call.1} parent=1 // loop_pre_header
      _
    $region3: #{tpu_custom_call.1} parent=1 // loop_header
      %s13 = sphi 0, %s17
      %p14 = scmp.ge.s32.totalorder %s13, 4
      %s20 = sphi 0, %s32
      %s21 = sphi 0, %s28
      %s22 = sphi 0, %s20
      %s23 = sphi 0, %s21
      %s24 = sphi 0, %s22
      %s25 = sphi 0, %s23
      %s37 = sphi 0, %s39
      %s40 = sphi 0, %s37
      %s41 = sphi 0, %s40
      %s57 = sphi 0, %s41
      %s61 = sphi 0, %s61
      %s63 = sphi 0, %s61
      %s64 = sphi 0, %s63
      %s78 = sphi 0, %s64
      %s82 = sphi 0, %s82
      %s84 = sphi 0, %s82
      %s85 = sphi 0, %s84
      %s99 = sphi 0, %s85
      %s107 = sphi 0, %s109
      %s110 = sphi 0, %s107
      %s111 = sphi 0, %s110
      %s127 = sphi 0, %s111
    $region4: #{tpu_custom_call.1} parent=1 // loop_header_branch
      %16 = sbr.rel (%p14) target = $region8
    $region5: #{tpu_custom_call.1} parent=1 // loop_body
      %s18 = ssub.s32 %s13, 1
      %s19 = ssub.s32 %s13, 2
      %s26 = sadd.s32 1, %s21
      %p27 = scmp.ge.s32.totalorder %s26, 1
      %s28 = scalar_select %p27, 0, %s26
      %s29 = sadd.s32 1, %s20
      %s30 = scalar_select %p27, %s29, %s20
      %p31 = scmp.ge.s32.totalorder %s30, 2
      %s32 = scalar_select %p31, 0, %s30
      %s33 = ssub.s32 %s20, %s32
      %s34 = ssub.s32 %s21, %s28
      %s35 = sor.u32 %s33, %s34
      %p36 = scmp.eq.s32.totalorder %s35, 0
      %s38 = sadd.s32 %s37, 1
      %s39 = scalar_select %p36, %s37, %s38
      %p42 = pneg %p36
      %p43 = scmp.eq.s32.totalorder %s13, 1
      %p44 = por %p42, %p43
      %p45 = scmp.ne.s32.totalorder %s37, %s40
      %p46 = scmp.eq.s32.totalorder %s13, 0
      %p47 = por %p45, %p46
      %p48 = scmp.ne.s32.totalorder %s37, %s40
      %p49 = scmp.eq.s32.totalorder %s18, 1
      %p50 = por %p48, %p49
      %p51 = scmp.ne.s32.totalorder %s40, %s41
      %p52 = scmp.eq.s32.totalorder %s18, 0
      %p53 = por %p51, %p52
      %p54 = scmp.ne.s32.totalorder %s40, %s41
      %p55 = scmp.eq.s32.totalorder %s19, 1
      %p56 = por %p54, %p55
      %p58 = scmp.ne.s32.totalorder %s41, %s57
      %p59 = scmp.eq.s32.totalorder %s19, 0
      %p60 = por %p58, %p59
      %s62 = sadd.s32 %s61, 1
      %p65 = scmp.eq.s32.totalorder %s13, 1
      %p66 = scmp.ne.s32.totalorder %s61, %s63
      %p67 = scmp.eq.s32.totalorder %s13, 0
      %p68 = por %p66, %p67
      %p69 = scmp.ne.s32.totalorder %s61, %s63
      %p70 = scmp.eq.s32.totalorder %s18, 1
      %p71 = por %p69, %p70
      %p72 = scmp.ne.s32.totalorder %s63, %s64
      %p73 = scmp.eq.s32.totalorder %s18, 0
      %p74 = por %p72, %p73
      %p75 = scmp.ne.s32.totalorder %s63, %s64
      %p76 = scmp.eq.s32.totalorder %s19, 1
      %p77 = por %p75, %p76
      %p79 = scmp.ne.s32.totalorder %s64, %s78
      %p80 = scmp.eq.s32.totalorder %s19, 0
      %p81 = por %p79, %p80
      %s83 = sadd.s32 %s82, 1
      %p86 = scmp.eq.s32.totalorder %s13, 1
      %p87 = scmp.ne.s32.totalorder %s82, %s84
      %p88 = scmp.eq.s32.totalorder %s13, 0
      %p89 = por %p87, %p88
      %p90 = scmp.ne.s32.totalorder %s82, %s84
      %p91 = scmp.eq.s32.totalorder %s18, 1
      %p92 = por %p90, %p91
      %p93 = scmp.ne.s32.totalorder %s84, %s85
      %p94 = scmp.eq.s32.totalorder %s18, 0
      %p95 = por %p93, %p94
      %p96 = scmp.ne.s32.totalorder %s84, %s85
      %p97 = scmp.eq.s32.totalorder %s19, 1
      %p98 = por %p96, %p97
      %p100 = scmp.ne.s32.totalorder %s85, %s99
      %p101 = scmp.eq.s32.totalorder %s19, 0
      %p102 = por %p100, %p101
      %s103 = ssub.s32 %s20, %s32
      %s104 = ssub.s32 %s21, %s28
      %s105 = sor.u32 %s103, %s104
      %p106 = scmp.eq.s32.totalorder %s105, 0
      %s108 = sadd.s32 %s107, 1
      %s109 = scalar_select %p106, %s107, %s108
      %p112 = pneg %p106
      %p113 = scmp.eq.s32.totalorder %s13, 1
      %p114 = por %p112, %p113
      %p115 = scmp.ne.s32.totalorder %s107, %s110
      %p116 = scmp.eq.s32.totalorder %s13, 0
      %p117 = por %p115, %p116
      %p118 = scmp.ne.s32.totalorder %s107, %s110
      %p119 = scmp.eq.s32.totalorder %s18, 1
      %p120 = por %p118, %p119
      %p121 = scmp.ne.s32.totalorder %s110, %s111
      %p122 = scmp.eq.s32.totalorder %s18, 0
      %p123 = por %p121, %p122
      %p124 = scmp.ne.s32.totalorder %s110, %s111
      %p125 = scmp.eq.s32.totalorder %s19, 1
      %p126 = por %p124, %p125
      %p128 = scmp.ne.s32.totalorder %s111, %s127
      %p129 = scmp.eq.s32.totalorder %s19, 0
      %p130 = por %p128, %p129
      %p131 = scmp.le.s32.totalorder 1, %s13
      %p132 = scmp.lt.s32.totalorder %s13, 3
      %p133 = pnand %p131, %p132
      %p134 = pneg %p133
      // Predicated region
      $region9: #{tpu_custom_call.1} parent=5 // pred_check
        _
      $region10: #{tpu_custom_call.1} parent=5 // pred_check_branch
        %136 = sbr.rel (%p133) target = $region12
      $region11: #{tpu_custom_call.1} parent=5 // pred_region
        %s137 = ssub.s32 %s13, 1
        // Predicated region
        $region13: #{tpu_custom_call.1} parent=11 // pred_check
          %p138 = pneg %p74
        $region14: #{tpu_custom_call.1} parent=11 // pred_check_branch
          %140 = sbr.rel (%p138) target = $region16
        $region15: #{tpu_custom_call.1} parent=11 // pred_region
          %142 = vsyncadd [#allocation3], 0
          %s143 = sshll.u32 %s1, 4
          %s144 = int_to_ptr.hbm [resolvable:$true] %s143
          %s145 = sshll.u32 [#allocation2], 4
          %s146 = int_to_ptr.vmem [resolvable:$true] %s145
          %151 = dma.hbm_to_vmem [thread:$0]  %s144, 3456, %s146, [#allocation3], 128, 128, 8
        $region16: #{tpu_custom_call.1} parent=11 // pred_fallthru
          _
        // Predicated region
        $region17: #{tpu_custom_call.1} parent=11 // pred_check
          %p152 = pneg %p95
        $region18: #{tpu_custom_call.1} parent=11 // pred_check_branch
          %154 = sbr.rel (%p152) target = $region20
        $region19: #{tpu_custom_call.1} parent=11 // pred_region
          _
        $region20: #{tpu_custom_call.1} parent=11 // pred_fallthru
          _
      $region12: #{tpu_custom_call.1} parent=5 // pred_fallthru
        _
      %p155 = scmp.lt.s32.totalorder %s13, 2
      // Predicated region
      $region21: #{tpu_custom_call.1} parent=5 // pred_check
        %p156 = pneg %p155
      $region22: #{tpu_custom_call.1} parent=5 // pred_check_branch
        %158 = sbr.rel (%p156) target = $region24
      $region23: #{tpu_custom_call.1} parent=5 // pred_region
        // Predicated region
        $region25: #{tpu_custom_call.1} parent=23 // pred_check
          %p159 = pneg %p47
        $region26: #{tpu_custom_call.1} parent=23 // pred_check_branch
          %161 = sbr.rel (%p159) target = $region28
        $region27: #{tpu_custom_call.1} parent=23 // pred_region
          %p162 = scmp.lt.s32.totalorder %s20, 1
          %s163 = scalar_select %p162, %s20, 1
          %p164 = scmp.lt.s32.totalorder %s21, 0
          %s165 = scalar_select %p164, %s21, 0
          %s166 = smul.addr %s165, 3
          %s167 = smul.addr %s163, 3
          %s168 = sadd.s32 %s166, %s167
          %s169 = smul.addr %s168, 8
          %s170 = scalar_lea.vmem %s0, %s169
        $region28: #{tpu_custom_call.1} parent=23 // pred_fallthru
          _
      $region24: #{tpu_custom_call.1} parent=5 // pred_fallthru
        _
      %p171 = scmp.le.s32.totalorder 1, %s13
      %p172 = scmp.lt.s32.totalorder %s13, 3
      %p173 = pnand %p171, %p172
      %p174 = pneg %p173
      // Predicated region
      $region29: #{tpu_custom_call.1} parent=5 // pred_check
        _
      $region30: #{tpu_custom_call.1} parent=5 // pred_check_branch
        %176 = sbr.rel (%p173) target = $region32
      $region31: #{tpu_custom_call.1} parent=5 // pred_region
        %s177 = ssub.s32 %s13, 1
        // Predicated region
        $region33: #{tpu_custom_call.1} parent=31 // pred_check
          %p178 = pneg %p74
        $region34: #{tpu_custom_call.1} parent=31 // pred_check_branch
          %180 = sbr.rel (%p178) target = $region36
        $region35: #{tpu_custom_call.1} parent=31 // pred_region
          %182 = dma.done [#allocation3], 3456
        $region36: #{tpu_custom_call.1} parent=31 // pred_fallthru
          _
        %p183 = scmp.lt.s32.totalorder %s22, 1
        %s184 = scalar_select %p183, %s22, 1
        %p185 = scmp.lt.s32.totalorder %s23, 0
        %s186 = scalar_select %p185, %s23, 0
        %s187 = smul.addr %s186, 3
        %s188 = smul.addr %s184, 3
        %s189 = sadd.s32 %s187, %s188
        %s190 = smul.addr %s189, 8
        %s191 = scalar_lea.vmem %s0, %s190
        %p192 = pneg %p53
        %p193 = pneg %p50
        %p194 = pneg %p74
        %p195 = pneg %p71
        %p196 = pneg %p95
        %p197 = pneg %p92
        %p198 = pneg %p123
        %p199 = pneg %p120
        %s200 = sand.u32 %s110, 1
        %s201 = scalar_lea.sflag [#allocation4], %s200
        %s202 = sand.u32 %s110, 1
        %s203 = smul.addr %s202, 16
        %s204 = scalar_lea.vmem [#allocation5], %s203
        %p205 = scmp.lt.s32.totalorder %s22, 1
        %s206 = scalar_select %p205, %s22, 1
        %p207 = scmp.lt.s32.totalorder %s23, 0
        %s208 = scalar_select %p207, %s23, 0
        %s209 = smul.addr %s208, 3
        %s210 = smul.addr %s206, 3
        %s211 = sadd.s32 %s209, %s210
        %s212 = smul.addr %s211, 8
        %s213 = scalar_lea.vmem %s0, %s212
        %s214 = smul.u32 2, %s23
        %v215 = vld [vmem:[%s213] sm:$0xff]
        %v216 = vld [vmem:[%s213 + $0x8] sm:$0xff]
        %v217 = vld [vmem:[#allocation2] sm:$0xff]
        %v218 = vld [vmem:[#allocation2 + $0x8] sm:$0xff]
        %v219 = vld [vmem:[#allocation2 + $0x10] sm:$0xff]
        %v220 = vld [vmem:[#allocation2 + $0x18] sm:$0xff]
        %v221 = vld [vmem:[#allocation2 + $0x20] sm:$0xff]
        %v222 = vld [vmem:[#allocation2 + $0x28] sm:$0xff]
        %v223 = vld [vmem:[#allocation2 + $0x30] sm:$0xff]
        %v224 = vld [vmem:[#allocation2 + $0x38] sm:$0xff]
        %v225 = vld [vmem:[#allocation2 + $0x40] sm:$0xff]
        %v226 = vld [vmem:[%s213 + $0x1] sm:$0xff]
        %v227 = vld [vmem:[%s213 + $0x9] sm:$0xff]
        %s228 = scalar_lea.vmem [#allocation2], 72
        %v229 = vld [vmem:[%s228] sm:$0xff]
        %v230 = vld [vmem:[%s228 + $0x8] sm:$0xff]
        %v231 = vld [vmem:[%s228 + $0x10] sm:$0xff]
        %v232 = vld [vmem:[%s228 + $0x18] sm:$0xff]
        %v233 = vld [vmem:[%s228 + $0x20] sm:$0xff]
        %v234 = vld [vmem:[%s228 + $0x28] sm:$0xff]
        %v235 = vld [vmem:[%s228 + $0x30] sm:$0xff]
        %v236 = vld [vmem:[%s228 + $0x38] sm:$0xff]
        %v237 = vld [vmem:[%s228 + $0x40] sm:$0xff]
        %vm238 = vcmask 588800
        %v240 = vsel %vm238, %v226, 0
        %v243 = vsel %vm238, %v227, 0
        %245 = vmatpush.msra.mxu0 0.0
        %246 = vmatpush.msra.mxu0 0.0
        %247 = vmatpush.msra.mxu0 0.0
        %248 = vmatpush.msra.mxu0 0.0
        %249 = vmatpush.msra.mxu0 0.0
        %250 = vmatpush.msra.mxu0 0.0
        %251 = vmatpush.msra.mxu0 0.0
        %252 = vmatpush.msra.mxu0 %v237
        %253 = vmatpush.msra.mxu0 %v236
        %254 = vmatpush.msra.mxu0 %v235
        %255 = vmatpush.msra.mxu0 %v234
        %256 = vmatpush.msra.mxu0 %v233
        %257 = vmatpush.msra.mxu0 %v232
        %258 = vmatpush.msra.mxu0 %v231
        %259 = vmatpush.msra.mxu0 %v230
        %260 = vmatpush.msra.mxu0 %v229
        %261 = vmatmul.f32.gmra.mxu0 %v240
        %v262 = vpop.f32.mrf.mxu0
        %v263 = vadd.f32 0.0, %v262
        %264 = vmatmul.f32.gmra.mxu0 %v243
        %v265 = vpop.f32.mrf.mxu0
        %v266 = vadd.f32 0.0, %v265
        %267 = vdwg.mxu0
        %v269 = vsel %vm238, %v215, 0
        %v272 = vsel %vm238, %v216, 0
        %274 = vmatpush.msra.mxu0 0.0
        %275 = vmatpush.msra.mxu0 0.0
        %276 = vmatpush.msra.mxu0 0.0
        %277 = vmatpush.msra.mxu0 0.0
        %278 = vmatpush.msra.mxu0 0.0
        %279 = vmatpush.msra.mxu0 0.0
        %280 = vmatpush.msra.mxu0 0.0
        %281 = vmatpush.msra.mxu0 %v225
        %282 = vmatpush.msra.mxu0 %v224
        %283 = vmatpush.msra.mxu0 %v223
        %284 = vmatpush.msra.mxu0 %v222
        %285 = vmatpush.msra.mxu0 %v221
        %286 = vmatpush.msra.mxu0 %v220
        %287 = vmatpush.msra.mxu0 %v219
        %288 = vmatpush.msra.mxu0 %v218
        %289 = vmatpush.msra.mxu0 %v217
        %290 = vmatmul.f32.gmra.mxu0 %v269
        %v291 = vpop.f32.mrf.mxu0
        %v292 = vadd.f32 %v263, %v291
        %293 = vmatmul.f32.gmra.mxu0 %v272
        %v294 = vpop.f32.mrf.mxu0
        %v295 = vadd.f32 %v266, %v294
        %296 = vdwg.mxu0
        %v297 = vld [vmem:[%s213 + $0x2] sm:$0xff]
        %v298 = vld [vmem:[%s213 + $0xa] sm:$0xff]
        %s299 = scalar_lea.vmem [#allocation2], 144
        %v300 = vld [vmem:[%s299] sm:$0xff]
        %v301 = vld [vmem:[%s299 + $0x8] sm:$0xff]
        %v302 = vld [vmem:[%s299 + $0x10] sm:$0xff]
        %v303 = vld [vmem:[%s299 + $0x18] sm:$0xff]
        %v304 = vld [vmem:[%s299 + $0x20] sm:$0xff]
        %v305 = vld [vmem:[%s299 + $0x28] sm:$0xff]
        %v306 = vld [vmem:[%s299 + $0x30] sm:$0xff]
        %v307 = vld [vmem:[%s299 + $0x38] sm:$0xff]
        %v308 = vld [vmem:[%s299 + $0x40] sm:$0xff]
        %v310 = vsel %vm238, %v297, 0
        %v313 = vsel %vm238, %v298, 0
        %315 = vmatpush.msra.mxu0 0.0
        %316 = vmatpush.msra.mxu0 0.0
        %317 = vmatpush.msra.mxu0 0.0
        %318 = vmatpush.msra.mxu0 0.0
        %319 = vmatpush.msra.mxu0 0.0
        %320 = vmatpush.msra.mxu0 0.0
        %321 = vmatpush.msra.mxu0 0.0
        %322 = vmatpush.msra.mxu0 %v308
        %323 = vmatpush.msra.mxu0 %v307
        %324 = vmatpush.msra.mxu0 %v306
        %325 = vmatpush.msra.mxu0 %v305
        %326 = vmatpush.msra.mxu0 %v304
        %327 = vmatpush.msra.mxu0 %v303
        %328 = vmatpush.msra.mxu0 %v302
        %329 = vmatpush.msra.mxu0 %v301
        %330 = vmatpush.msra.mxu0 %v300
        %331 = vmatmul.f32.gmra.mxu0 %v310
        %v332 = vpop.f32.mrf.mxu0
        %v333 = vadd.f32 0.0, %v332
        %334 = vmatmul.f32.gmra.mxu0 %v313
        %v335 = vpop.f32.mrf.mxu0
        %v336 = vadd.f32 0.0, %v335
        %337 = vdwg.mxu0
        %v338 = vadd.f32 %v292, %v333
        %v339 = vadd.f32 %v295, %v336
        %v340 = vld [vmem:[%s2] sm:$0x1]
        %v342 = vperm.slane %v340, 0
        %v344 = vadd.f32 %v338, %v342
        %v345 = vadd.f32 %v339, %v342
        %vm346 = vcmp.gt.f32.partialorder %v344, 0.0
        %vm347 = vcmp.gt.f32.partialorder %v345, 0.0
        %v348 = vmul.f32 %v344, 0.1
        %v349 = vmul.f32 %v345, 0.1
        %v350 = vsel %vm346, %v344, %v348
        %v351 = vsel %vm347, %v345, %v349
        %352 = vst [vmem:[%s204] sm:$0xff] %v350
        %353 = vst [vmem:[%s204 + $0x8] sm:$0xff] %v351
        %s354 = sand.u32 %s110, 1
        %s355 = scalar_lea.sflag [#allocation4], %s354
        %s356 = sand.u32 %s110, 1
        %s357 = smul.addr %s356, 16
        %s358 = scalar_lea.vmem [#allocation5], %s357
        // Predicated region
        $region37: #{tpu_custom_call.1} parent=31 // pred_check
          %p359 = pneg %p120
        $region38: #{tpu_custom_call.1} parent=31 // pred_check_branch
          %361 = sbr.rel (%p359) target = $region40
        $region39: #{tpu_custom_call.1} parent=31 // pred_region
          %s362 = smul.u32 2, %s23
          %364 = vsyncadd %s355, 0
          %s365 = smul.addr %s22, 2
          %s366 = sadd.s32 %s362, %s365
          %s367 = smul.addr %s366, 8
          %s368 = scalar_lea.hbm %s3, %s367
          %s369 = sshll.u32 %s358, 4
          %s370 = int_to_ptr.vmem [resolvable:$true] %s369
          %s371 = sshll.u32 %s368, 4
          %s372 = int_to_ptr.hbm [resolvable:$true] %s371
          %377 = dma.vmem_to_hbm [thread:$0]  %s370, 256, %s372, %s355, 128, 128, 8
        $region40: #{tpu_custom_call.1} parent=31 // pred_fallthru
          _
      $region32: #{tpu_custom_call.1} parent=5 // pred_fallthru
        _
      %p378 = scmp.le.s32.totalorder 2, %s13
      // Predicated region
      $region41: #{tpu_custom_call.1} parent=5 // pred_check
        %p379 = pneg %p378
      $region42: #{tpu_custom_call.1} parent=5 // pred_check_branch
        %381 = sbr.rel (%p379) target = $region44
      $region43: #{tpu_custom_call.1} parent=5 // pred_region
        %s382 = ssub.s32 %s13, 2
        // Predicated region
        $region45: #{tpu_custom_call.1} parent=43 // pred_check
          %p383 = pneg %p126
        $region46: #{tpu_custom_call.1} parent=43 // pred_check_branch
          %385 = sbr.rel (%p383) target = $region48
        $region47: #{tpu_custom_call.1} parent=43 // pred_region
          %s386 = sand.u32 %s111, 1
          %s387 = scalar_lea.sflag [#allocation4], %s386
          %s388 = sand.u32 %s111, 1
          %s389 = smul.addr %s388, 16
          %s390 = scalar_lea.vmem [#allocation5], %s389
          %392 = dma.done %s387, 256
        $region48: #{tpu_custom_call.1} parent=43 // pred_fallthru
          _
      $region44: #{tpu_custom_call.1} parent=5 // pred_fallthru
        _
    $region6: #{tpu_custom_call.1} parent=1 // loop_footer
      %s17 = sadd.s32 1, %s13
    $region7: #{tpu_custom_call.1} parent=1 // loop_footer_branch
      %12 = sbr.rel target = $region3
    $region8: #{tpu_custom_call.1} parent=1 // loop_exit
      _
    %393 = vsyncpa [#allocation3], 1
    %s394 = scalar_lea.sflag [#allocation3], 1
    %395 = vsyncpa %s394, 1
    %396 = vsyncpa [#allocation4], 1
    %s397 = scalar_lea.sflag [#allocation4], 1
    %398 = vsyncpa %s397, 1

</llo_original>
